<compile_context>
chip_gen: v7x
topology: tpu7x:2x2x1
jax: 0.10.0
libtpu: 0.0.40
codegen_flags: <defaults>
</compile_context>

<pallas_src>
import functools

import jax
import jax.numpy as jnp
import numpy as np
from jax import lax
from jax.experimental import pallas as pl
from jax.experimental.pallas import tpu as pltpu


def _pairwise_kernel(ctx_ref, tgt_ref, wc_ref, bc_ref, wt_ref, bt_ref,
                     loss_ref, acc_ref,
                     tproj_ref, colmax_ref, colsum_ref, acc_smem,
                     *, temperature, k, batch, block_rows, mxu_dtype):
    step = pl.program_id(0)
    last = pl.num_programs(0) - 1
    inv_t = 1.0 / temperature
    row_start = pl.multiple_of(step * block_rows, block_rows)

    @pl.when(step == 0)
    def _init():
        # Target projection (Projector ~ nn.Linear), resident across all tiles.
        t_proj = jnp.dot(tgt_ref[...], wt_ref[...],
                         preferred_element_type=jnp.float32)
        tproj_ref[...] = t_proj + bt_ref[...].astype(jnp.float32)
        colmax_ref[...] = jnp.full(colmax_ref.shape, -jnp.inf, jnp.float32)
        colsum_ref[...] = jnp.zeros(colsum_ref.shape, jnp.float32)
        acc_smem[0] = 0.0   # sum_i (lse_row_i - diag_i)
        acc_smem[1] = 0.0   # sum_i diag_i
        acc_smem[2] = 0.0   # sum_i [rank_i < k]

    # --- context projection for this row tile -------------------------------
    c_proj = (jnp.dot(ctx_ref[...], wc_ref[...],
                      preferred_element_type=jnp.float32)
              + bc_ref[...].astype(jnp.float32))                      # (TM, P)

    t_all = tproj_ref[...]                                            # (B, P)
    if mxu_dtype is None:
        c_mm, t_mm = c_proj, t_all
    else:
        c_mm, t_mm = c_proj.astype(mxu_dtype), t_all.astype(mxu_dtype)

    # --- logits tile: contract last dims (no materialized transpose) --------
    logits = lax.dot_general(
        c_mm, t_mm, dimension_numbers=(((1,), (1,)), ((), ())),
        preferred_element_type=jnp.float32) * inv_t                   # (TM, B)

    # --- diagonal directly from projections: O(TM*P), no BxB mask -----------
    t_rows = tproj_ref[pl.ds(row_start, block_rows), :]               # (TM, P)
    diag = jnp.sum(c_proj * t_rows, axis=1, keepdims=True) * inv_t    # (TM, 1)

    # --- row softmax stats (single exp pass over the tile) ------------------
    m_r = jnp.max(logits, axis=1, keepdims=True)                      # (TM, 1)
    p = jnp.exp(logits - m_r)                                         # (TM, B)
    lse_r = m_r + jnp.log(jnp.sum(p, axis=1, keepdims=True))          # (TM, 1)

    # --- top-k rank fused on the in-register logits tile --------------------
    # i is in its row's top-k iff fewer than k off-diagonal entries strictly
    # exceed logits[i, i] (diagonal column excluded so MXU/VPU rounding of the
    # diagonal cannot produce a spurious "greater").
    col_ids = lax.broadcasted_iota(jnp.int32, logits.shape, 1)
    row_gids = row_start + lax.broadcasted_iota(jnp.int32, logits.shape, 0)
    beats = jnp.logical_and(logits > diag, col_ids != row_gids)
    rank = jnp.sum(beats.astype(jnp.float32), axis=1, keepdims=True)  # (TM, 1)

    # --- online per-column (max, sumexp), reusing p --------------------------
    # exp(logits - A) == p * exp(m_r - A), with A = tile max (so weights <= 1).
    a_tile = jnp.max(m_r)
    contrib = jnp.sum(p * jnp.exp(m_r - a_tile), axis=0, keepdims=True)  # (1,B)
    new_ref = jnp.maximum(colmax_ref[...], a_tile)
    colsum_ref[...] = (colsum_ref[...] * jnp.exp(colmax_ref[...] - new_ref)
                       + contrib * jnp.exp(a_tile - new_ref))
    colmax_ref[...] = new_ref

    acc_smem[0] = acc_smem[0] + jnp.sum(lse_r - diag)
    acc_smem[1] = acc_smem[1] + jnp.sum(diag)
    acc_smem[2] = acc_smem[2] + jnp.sum((rank < float(k)).astype(jnp.float32))

    @pl.when(step == last)
    def _finish():
        lse_c = colmax_ref[...] + jnp.log(colsum_ref[...])            # (1, B)
        loss_r = acc_smem[0] / float(batch)
        loss_c = (jnp.sum(lse_c) - acc_smem[1]) / float(batch)
        loss_ref[0] = 0.5 * (loss_r + loss_c)
        acc_ref[0] = acc_smem[2] / float(batch)


def pairwise_forward(ctx_enc, tgt_enc, wc, bc, wt, bt, *, temperature=1.0, k=1,
                     block_rows=128, mxu_dtype=None):
    """Fused Pairwise.forward given pre-computed encoder outputs.

    Returns (loss, topk_accuracy) as float32 scalars.
    Pass bf16 encodings/weights and/or mxu_dtype=jnp.bfloat16 on v5e/v6e to run
    the matmuls on the bf16 MXU path (f32 accumulation, f32 softmax/loss).
    """
    b, d_ctx = ctx_enc.shape
    b_t, d_tgt = tgt_enc.shape
    assert b == b_t, "context/target batch mismatch"
    p_dim = wc.shape[1]
    assert wt.shape[1] == p_dim

    tm = block_rows if (b % block_rows == 0) else b
    grid = (b // tm,)

    kernel = functools.partial(
        _pairwise_kernel, temperature=float(temperature), k=int(k),
        batch=int(b), block_rows=int(tm), mxu_dtype=mxu_dtype)

    # Rough per-step VMEM working set -> scoped-VMEM limit (never below the
    # 32 MiB default; large-batch callers should also size `block_rows` so this
    # stays well under 64 MiB on v7x / 128 MiB on v5e/v6e).
    itemsize = jnp.dtype(ctx_enc.dtype).itemsize
    est = (2 * tm * d_ctx * itemsize                 # double-buffered ctx tiles
           + b * d_tgt * itemsize                    # resident target encodings
           + (d_ctx + d_tgt + 2) * p_dim * itemsize  # projector weights/biases
           + b * p_dim * 4 + 2 * b * 4               # t_proj + column accums
           + 4 * tm * max(b, 128) * 4)               # logits/p/mask temporaries
    vmem_limit = int(max(32 * 1024 * 1024, 2 * est))

    smem = pltpu.MemorySpace.SMEM
    loss, acc = pl.pallas_call(
        kernel,
        out_shape=(jax.ShapeDtypeStruct((1,), jnp.float32),
                   jax.ShapeDtypeStruct((1,), jnp.float32)),
        grid_spec=pltpu.PrefetchScalarGridSpec(
            num_scalar_prefetch=0,
            grid=grid,
            in_specs=[
                pl.BlockSpec((tm, d_ctx), lambda i: (i, 0)),   # ctx row tile
                pl.BlockSpec((b, d_tgt), lambda i: (0, 0)),    # tgt (resident)
                pl.BlockSpec((d_ctx, p_dim), lambda i: (0, 0)),
                pl.BlockSpec((1, p_dim), lambda i: (0, 0)),
                pl.BlockSpec((d_tgt, p_dim), lambda i: (0, 0)),
                pl.BlockSpec((1, p_dim), lambda i: (0, 0)),
            ],
            out_specs=(
                pl.BlockSpec((1,), lambda i: (0,), memory_space=smem),
                pl.BlockSpec((1,), lambda i: (0,), memory_space=smem),
            ),
            scratch_shapes=[
                pltpu.VMEM((b, p_dim), jnp.float32),   # resident t_proj
                pltpu.VMEM((1, b), jnp.float32),       # running column max
                pltpu.VMEM((1, b), jnp.float32),       # running column sum-exp
                pltpu.SMEM((3,), jnp.float32),         # scalar accumulators
            ]),
        compiler_params=pltpu.CompilerParams(
            # The row-tile axis carries the column accumulators -> "arbitrary".
            # TODO(synk): for v7x megacore, emit per-tile partial (max, sumexp)
            # outputs + tiny JAX epilogue so this axis could be "parallel".
            dimension_semantics=("arbitrary",),
            vmem_limit_bytes=vmem_limit,
        ),
    )(ctx_enc, tgt_enc, wc, bc.reshape(1, -1), wt, bt.reshape(1, -1))
    return loss[0], acc[0]


def _reference(ctx_enc, tgt_enc, wc, bc, wt, bt, temperature, k):
    c = ctx_enc.astype(jnp.float32) @ wc.astype(jnp.float32) + bc
    t = tgt_enc.astype(jnp.float32) @ wt.astype(jnp.float32) + bt
    logits = (c @ t.T) / temperature
    b = logits.shape[0]
    labels = jnp.arange(b)
    lse_r = jax.scipy.special.logsumexp(logits, axis=1)
    lse_c = jax.scipy.special.logsumexp(logits, axis=0)
    diag = jnp.diag(logits)
    loss = 0.5 * (jnp.mean(lse_r - diag) + jnp.mean(lse_c - diag))
    topk = jnp.argsort(-logits, axis=1)[:, :k]
    acc = jnp.mean(jnp.any(topk == labels[:, None], axis=1).astype(jnp.float32))
    return loss, acc


if __name__ == "__main__":
    # Small, module-consistent shapes: batch of 16 (context, target) pairs,
    # context encoder size 32, target encoder size 48, projection_size 16.
    # block_rows=8 -> a 2-step grid, exercising the online column softmax.
    B, D_CTX, D_TGT, P = 16, 32, 48, 16

    key = jax.random.PRNGKey(0)
    k1, k2, k3, k4, k5, k6 = jax.random.split(key, 6)
    ctx_enc = jax.random.normal(k1, (B, D_CTX), dtype=jnp.float32)
    tgt_enc = jax.random.normal(k2, (B, D_TGT), dtype=jnp.float32)
    # Projector parameters (deterministic synthetic init, Linear-style scale).
    wc = jax.random.normal(k3, (D_CTX, P), dtype=jnp.float32) / jnp.sqrt(D_CTX)
    bc = jax.random.normal(k4, (P,), dtype=jnp.float32) * 0.01
    wt = jax.random.normal(k5, (D_TGT, P), dtype=jnp.float32) / jnp.sqrt(D_TGT)
    bt = jax.random.normal(k6, (P,), dtype=jnp.float32) * 0.01

    for temperature, k in ((1.0, 1), (0.7, 3)):
        loss, acc = pairwise_forward(ctx_enc, tgt_enc, wc, bc, wt, bt,
                                     temperature=temperature, k=k,
                                     block_rows=8)
        jax.block_until_ready((loss, acc))
        ref_loss, ref_acc = _reference(ctx_enc, tgt_enc, wc, bc, wt, bt,
                                       temperature, k)
        assert np.allclose(np.asarray(loss), np.asarray(ref_loss),
                           rtol=1e-3, atol=1e-4), (temperature, k, loss, ref_loss)
        assert np.allclose(np.asarray(acc), np.asarray(ref_acc),
                           rtol=1e-5, atol=1e-6), (temperature, k, acc, ref_acc)

    print("KERNEL_OK")
</pallas_src>

<mosaic_0001>
module attributes {stable_mosaic.version = 11 : i64} {
  func.func @_pairwise_kernel(%arg0: i32, %arg1: memref<8x32xf32, #tpu.memory_space<vmem>>, %arg2: memref<16x48xf32, #tpu.memory_space<vmem>>, %arg3: memref<32x16xf32, #tpu.memory_space<vmem>>, %arg4: memref<1x16xf32, #tpu.memory_space<vmem>>, %arg5: memref<48x16xf32, #tpu.memory_space<vmem>>, %arg6: memref<1x16xf32, #tpu.memory_space<vmem>>, %arg7: memref<1xf32, #tpu.memory_space<smem>>, %arg8: memref<1xf32, #tpu.memory_space<smem>>, %arg9: memref<16x16xf32, #tpu.memory_space<vmem>>, %arg10: memref<1x16xf32, #tpu.memory_space<vmem>>, %arg11: memref<1x16xf32, #tpu.memory_space<vmem>>, %arg12: memref<3xf32, #tpu.memory_space<smem>>) attributes {dimension_semantics = [#tpu.dimension_semantics<arbitrary>], iteration_bounds = array<i64: 2>, scalar_prefetch = 0 : i64, scratch_operands = 4 : i64, tpu.core_type = #tpu.core_type<tc>, window_params = [{transform_indices = @transform_0, window_bounds = array<i64: 8, 32>}, {pipeline_mode = #tpu.pipeline_mode<synchronous>, transform_indices = @transform_1, window_bounds = array<i64: 16, 48>}, {pipeline_mode = #tpu.pipeline_mode<synchronous>, transform_indices = @transform_2, window_bounds = array<i64: 32, 16>}, {pipeline_mode = #tpu.pipeline_mode<synchronous>, transform_indices = @transform_3, window_bounds = array<i64: 1, 16>}, {pipeline_mode = #tpu.pipeline_mode<synchronous>, transform_indices = @transform_4, window_bounds = array<i64: 48, 16>}, {pipeline_mode = #tpu.pipeline_mode<synchronous>, transform_indices = @transform_5, window_bounds = array<i64: 1, 16>}, {transform_indices = @transform_6, window_bounds = array<i64: 1>}, {transform_indices = @transform_7, window_bounds = array<i64: 1>}]} {
    %c8_i32 = arith.constant 8 : i32
    %0 = arith.muli %arg0, %c8_i32 : i32
    %1 = tpu.assume_multiple %0, 8 : i32
    %c0_i32 = arith.constant 0 : i32
    %2 = arith.cmpi eq, %arg0, %c0_i32 : i32
    %3 = arith.extui %2 : i1 to i32
    %c0_i32_0 = arith.constant 0 : i32
    %4 = arith.cmpi ne, %3, %c0_i32_0 : i32
    scf.if %4 {
      %c0_37 = arith.constant 0 : index
      %c0_38 = arith.constant 0 : index
      %98 = vector.load %arg2[%c0_37, %c0_38] : memref<16x48xf32, #tpu.memory_space<vmem>>, vector<16x48xf32>
      %c0_39 = arith.constant 0 : index
      %c0_40 = arith.constant 0 : index
      %99 = vector.load %arg5[%c0_39, %c0_40] : memref<48x16xf32, #tpu.memory_space<vmem>>, vector<48x16xf32>
      %cst_41 = arith.constant dense<0.000000e+00> : vector<16x16xf32>
      %100 = tpu.matmul %98, %99, %cst_41 {dimension_numbers = #tpu.dot_dimension_numbers<[1], [0], [0], [1], [0, 0, 1, 1], [], []>} : vector<16x48xf32>, vector<48x16xf32>, vector<16x16xf32> -> vector<16x16xf32>
      %c0_42 = arith.constant 0 : index
      %c0_43 = arith.constant 0 : index
      %101 = vector.load %arg6[%c0_42, %c0_43] : memref<1x16xf32, #tpu.memory_space<vmem>>, vector<1x16xf32>
      %102 = vector.broadcast %101 : vector<1x16xf32> to vector<16x16xf32>
      %103 = arith.addf %100, %102 : vector<16x16xf32>
      %c0_44 = arith.constant 0 : index
      %c0_45 = arith.constant 0 : index
      %104 = vector.load %arg9[%c0_44, %c0_45] : memref<16x16xf32, #tpu.memory_space<vmem>>, vector<16x16xf32>
      tpu.vector_store %arg9[%c0_44, %c0_45], %103 {strides = array<i32>} : memref<16x16xf32, #tpu.memory_space<vmem>>, vector<16x16xf32>,
      %cst_46 = arith.constant 0xFF800000 : f32
      %105 = vector.broadcast %cst_46 : f32 to vector<1x16xf32>
      %c0_47 = arith.constant 0 : index
      %c0_48 = arith.constant 0 : index
      %106 = vector.load %arg10[%c0_47, %c0_48] : memref<1x16xf32, #tpu.memory_space<vmem>>, vector<1x16xf32>
      tpu.vector_store %arg10[%c0_47, %c0_48], %105 {strides = array<i32>} : memref<1x16xf32, #tpu.memory_space<vmem>>, vector<1x16xf32>,
      %cst_49 = arith.constant 0.000000e+00 : f32
      %107 = vector.broadcast %cst_49 : f32 to vector<1x16xf32>
      %c0_50 = arith.constant 0 : index
      %c0_51 = arith.constant 0 : index
      %108 = vector.load %arg11[%c0_50, %c0_51] : memref<1x16xf32, #tpu.memory_space<vmem>>, vector<1x16xf32>
      tpu.vector_store %arg11[%c0_50, %c0_51], %107 {strides = array<i32>} : memref<1x16xf32, #tpu.memory_space<vmem>>, vector<1x16xf32>,
      %cst_52 = arith.constant 0.000000e+00 : f32
      %c0_53 = arith.constant 0 : index
      %109 = memref.load %arg12[%c0_53] : memref<3xf32, #tpu.memory_space<smem>>
      memref.store %cst_52, %arg12[%c0_53] : memref<3xf32, #tpu.memory_space<smem>>
      %cst_54 = arith.constant 0.000000e+00 : f32
      %c1_55 = arith.constant 1 : index
      %110 = memref.load %arg12[%c1_55] : memref<3xf32, #tpu.memory_space<smem>>
      memref.store %cst_54, %arg12[%c1_55] : memref<3xf32, #tpu.memory_space<smem>>
      %cst_56 = arith.constant 0.000000e+00 : f32
      %c2_57 = arith.constant 2 : index
      %111 = memref.load %arg12[%c2_57] : memref<3xf32, #tpu.memory_space<smem>>
      memref.store %cst_56, %arg12[%c2_57] : memref<3xf32, #tpu.memory_space<smem>>
    } else {
    }
    %c0 = arith.constant 0 : index
    %c0_1 = arith.constant 0 : index
    %5 = vector.load %arg1[%c0, %c0_1] : memref<8x32xf32, #tpu.memory_space<vmem>>, vector<8x32xf32>
    %c0_2 = arith.constant 0 : index
    %c0_3 = arith.constant 0 : index
    %6 = vector.load %arg3[%c0_2, %c0_3] : memref<32x16xf32, #tpu.memory_space<vmem>>, vector<32x16xf32>
    %cst = arith.constant dense<0.000000e+00> : vector<8x16xf32>
    %7 = tpu.matmul %5, %6, %cst {dimension_numbers = #tpu.dot_dimension_numbers<[1], [0], [0], [1], [0, 0, 1, 1], [], []>} : vector<8x32xf32>, vector<32x16xf32>, vector<8x16xf32> -> vector<8x16xf32>
    %c0_4 = arith.constant 0 : index
    %c0_5 = arith.constant 0 : index
    %8 = vector.load %arg4[%c0_4, %c0_5] : memref<1x16xf32, #tpu.memory_space<vmem>>, vector<1x16xf32>
    %9 = vector.broadcast %8 : vector<1x16xf32> to vector<8x16xf32>
    %10 = arith.addf %7, %9 : vector<8x16xf32>
    %c0_6 = arith.constant 0 : index
    %c0_7 = arith.constant 0 : index
    %11 = vector.load %arg9[%c0_6, %c0_7] : memref<16x16xf32, #tpu.memory_space<vmem>>, vector<16x16xf32>
    %cst_8 = arith.constant dense<0.000000e+00> : vector<8x16xf32>
    %12 = tpu.matmul %10, %11, %cst_8 {dimension_numbers = #tpu.dot_dimension_numbers<[1], [1], [0], [0], [0, 0, 1, 0], [], []>} : vector<8x16xf32>, vector<16x16xf32>, vector<8x16xf32> -> vector<8x16xf32>
    %cst_9 = arith.constant 1.000000e+00 : f32
    %13 = vector.broadcast %cst_9 : f32 to vector<8x16xf32>
    %14 = arith.mulf %12, %13 : vector<8x16xf32>
    %15 = arith.index_cast %1 : i32 to index
    %c0_10 = arith.constant 0 : index
    %16 = vector.load %arg9[%15, %c0_10] : memref<16x16xf32, #tpu.memory_space<vmem>>, vector<8x16xf32>
    %17 = arith.mulf %10, %16 : vector<8x16xf32>
    %cst_11 = arith.constant dense<0.000000e+00> : vector<8xf32>
    %18 = vector.multi_reduction <add>, %17, %cst_11 [1] : vector<8x16xf32> to vector<8xf32>
    %19 = vector.shape_cast %18 : vector<8xf32> to vector<8x1xf32>
    %cst_12 = arith.constant 1.000000e+00 : f32
    %20 = vector.broadcast %cst_12 : f32 to vector<8x1xf32>
    %21 = arith.mulf %19, %20 : vector<8x1xf32>
    %cst_13 = arith.constant dense<0xFF800000> : vector<8xf32>
    %22 = vector.multi_reduction <maximumf>, %14, %cst_13 [1] : vector<8x16xf32> to vector<8xf32>
    %23 = vector.shape_cast %22 : vector<8xf32> to vector<8x1xf32>
    %24 = vector.broadcast %23 : vector<8x1xf32> to vector<8x16xf32>
    %25 = arith.subf %14, %24 : vector<8x16xf32>
    %26 = math.exp %25 : vector<8x16xf32>
    %cst_14 = arith.constant dense<0.000000e+00> : vector<8xf32>
    %27 = vector.multi_reduction <add>, %26, %cst_14 [1] : vector<8x16xf32> to vector<8xf32>
    %28 = vector.shape_cast %27 : vector<8xf32> to vector<8x1xf32>
    %29 = math.log %28 : vector<8x1xf32>
    %30 = arith.addf %23, %29 : vector<8x1xf32>
    %31 = tpu.iota {dimensions = array<i32: 1>} : vector<8x16xi32>
    %32 = tpu.iota {dimensions = array<i32: 0>} : vector<8x16xi32>
    %33 = vector.broadcast %1 : i32 to vector<8x16xi32>
    %34 = arith.addi %33, %32 : vector<8x16xi32>
    %35 = vector.broadcast %21 : vector<8x1xf32> to vector<8x16xf32>
    %36 = arith.cmpf ogt, %14, %35 : vector<8x16xf32>
    %37 = arith.cmpi ne, %31, %34 : vector<8x16xi32>
    %38 = arith.andi %36, %37 : vector<8x16xi1>
    %39 = arith.extui %38 : vector<8x16xi1> to vector<8x16xi32>
    %40 = arith.sitofp %39 : vector<8x16xi32> to vector<8x16xf32>
    %cst_15 = arith.constant dense<0.000000e+00> : vector<8xf32>
    %41 = vector.multi_reduction <add>, %40, %cst_15 [1] : vector<8x16xf32> to vector<8xf32>
    %42 = vector.shape_cast %41 : vector<8xf32> to vector<8x1xf32>
    %43 = vector.shape_cast %23 : vector<8x1xf32> to vector<1x8x1xf32>
    %cst_16 = arith.constant dense<0xFF800000> : vector<1xf32>
    %44 = vector.multi_reduction <maximumf>, %43, %cst_16 [1, 2] : vector<1x8x1xf32> to vector<1xf32>
    %45 = vector.shape_cast %44 : vector<1xf32> to vector<1x1x1xf32>
    %46 = vector.extract %45[0, 0, 0] : f32 from vector<1x1x1xf32>
    %47 = vector.broadcast %46 : f32 to vector<8x1xf32>
    %48 = arith.subf %23, %47 : vector<8x1xf32>
    %49 = math.exp %48 : vector<8x1xf32>
    %50 = vector.broadcast %49 : vector<8x1xf32> to vector<8x16xf32>
    %51 = arith.mulf %26, %50 : vector<8x16xf32>
    %cst_17 = arith.constant dense<0.000000e+00> : vector<16xf32>
    %52 = vector.multi_reduction <add>, %51, %cst_17 [0] : vector<8x16xf32> to vector<16xf32>
    %53 = vector.shape_cast %52 : vector<16xf32> to vector<1x16xf32>
    %c0_18 = arith.constant 0 : index
    %c0_19 = arith.constant 0 : index
    %54 = vector.load %arg10[%c0_18, %c0_19] : memref<1x16xf32, #tpu.memory_space<vmem>>, vector<1x16xf32>
    %55 = vector.broadcast %46 : f32 to vector<1x16xf32>
    %56 = arith.maximumf %54, %55 : vector<1x16xf32>
    %c0_20 = arith.constant 0 : index
    %c0_21 = arith.constant 0 : index
    %57 = vector.load %arg11[%c0_20, %c0_21] : memref<1x16xf32, #tpu.memory_space<vmem>>, vector<1x16xf32>
    %c0_22 = arith.constant 0 : index
    %c0_23 = arith.constant 0 : index
    %58 = vector.load %arg10[%c0_22, %c0_23] : memref<1x16xf32, #tpu.memory_space<vmem>>, vector<1x16xf32>
    %59 = arith.subf %58, %56 : vector<1x16xf32>
    %60 = math.exp %59 : vector<1x16xf32>
    %61 = arith.mulf %57, %60 : vector<1x16xf32>
    %62 = vector.broadcast %46 : f32 to vector<1x16xf32>
    %63 = arith.subf %62, %56 : vector<1x16xf32>
    %64 = math.exp %63 : vector<1x16xf32>
    %65 = arith.mulf %53, %64 : vector<1x16xf32>
    %66 = arith.addf %61, %65 : vector<1x16xf32>
    %c0_24 = arith.constant 0 : index
    %c0_25 = arith.constant 0 : index
    %67 = vector.load %arg11[%c0_24, %c0_25] : memref<1x16xf32, #tpu.memory_space<vmem>>, vector<1x16xf32>
    tpu.vector_store %arg11[%c0_24, %c0_25], %66 {strides = array<i32>} : memref<1x16xf32, #tpu.memory_space<vmem>>, vector<1x16xf32>,
    %c0_26 = arith.constant 0 : index
    %c0_27 = arith.constant 0 : index
    %68 = vector.load %arg10[%c0_26, %c0_27] : memref<1x16xf32, #tpu.memory_space<vmem>>, vector<1x16xf32>
    tpu.vector_store %arg10[%c0_26, %c0_27], %56 {strides = array<i32>} : memref<1x16xf32, #tpu.memory_space<vmem>>, vector<1x16xf32>,
    %c0_28 = arith.constant 0 : index
    %69 = memref.load %arg12[%c0_28] : memref<3xf32, #tpu.memory_space<smem>>
    %70 = arith.subf %30, %21 : vector<8x1xf32>
    %71 = vector.shape_cast %70 : vector<8x1xf32> to vector<1x8x1xf32>
    %cst_29 = arith.constant dense<0.000000e+00> : vector<1xf32>
    %72 = vector.multi_reduction <add>, %71, %cst_29 [1, 2] : vector<1x8x1xf32> to vector<1xf32>
    %73 = vector.shape_cast %72 : vector<1xf32> to vector<1x1x1xf32>
    %74 = vector.extract %73[0, 0, 0] : f32 from vector<1x1x1xf32>
    %75 = arith.addf %69, %74 : f32
    %c0_30 = arith.constant 0 : index
    %76 = memref.load %arg12[%c0_30] : memref<3xf32, #tpu.memory_space<smem>>
    memref.store %75, %arg12[%c0_30] : memref<3xf32, #tpu.memory_space<smem>>
    %c1 = arith.constant 1 : index
    %77 = memref.load %arg12[%c1] : memref<3xf32, #tpu.memory_space<smem>>
    %78 = vector.shape_cast %21 : vector<8x1xf32> to vector<1x8x1xf32>
    %cst_31 = arith.constant dense<0.000000e+00> : vector<1xf32>
    %79 = vector.multi_reduction <add>, %78, %cst_31 [1, 2] : vector<1x8x1xf32> to vector<1xf32>
    %80 = vector.shape_cast %79 : vector<1xf32> to vector<1x1x1xf32>
    %81 = vector.extract %80[0, 0, 0] : f32 from vector<1x1x1xf32>
    %82 = arith.addf %77, %81 : f32
    %c1_32 = arith.constant 1 : index
    %83 = memref.load %arg12[%c1_32] : memref<3xf32, #tpu.memory_space<smem>>
    memref.store %82, %arg12[%c1_32] : memref<3xf32, #tpu.memory_space<smem>>
    %c2 = arith.constant 2 : index
    %84 = memref.load %arg12[%c2] : memref<3xf32, #tpu.memory_space<smem>>
    %cst_33 = arith.constant 1.000000e+00 : f32
    %85 = vector.broadcast %cst_33 : f32 to vector<8x1xf32>
    %86 = arith.cmpf olt, %42, %85 : vector<8x1xf32>
    %87 = arith.extui %86 : vector<8x1xi1> to vector<8x1xi32>
    %88 = arith.sitofp %87 : vector<8x1xi32> to vector<8x1xf32>
    %89 = vector.shape_cast %88 : vector<8x1xf32> to vector<1x8x1xf32>
    %cst_34 = arith.constant dense<0.000000e+00> : vector<1xf32>
    %90 = vector.multi_reduction <add>, %89, %cst_34 [1, 2] : vector<1x8x1xf32> to vector<1xf32>
    %91 = vector.shape_cast %90 : vector<1xf32> to vector<1x1x1xf32>
    %92 = vector.extract %91[0, 0, 0] : f32 from vector<1x1x1xf32>
    %93 = arith.addf %84, %92 : f32
    %c2_35 = arith.constant 2 : index
    %94 = memref.load %arg12[%c2_35] : memref<3xf32, #tpu.memory_space<smem>>
    memref.store %93, %arg12[%c2_35] : memref<3xf32, #tpu.memory_space<smem>>
    %c1_i32 = arith.constant 1 : i32
    %95 = arith.cmpi eq, %arg0, %c1_i32 : i32
    %96 = arith.extui %95 : i1 to i32
    %c0_i32_36 = arith.constant 0 : i32
    %97 = arith.cmpi ne, %96, %c0_i32_36 : i32
    scf.if %97 {
      %c0_37 = arith.constant 0 : index
      %c0_38 = arith.constant 0 : index
      %98 = vector.load %arg10[%c0_37, %c0_38] : memref<1x16xf32, #tpu.memory_space<vmem>>, vector<1x16xf32>
      %c0_39 = arith.constant 0 : index
      %c0_40 = arith.constant 0 : index
      %99 = vector.load %arg11[%c0_39, %c0_40] : memref<1x16xf32, #tpu.memory_space<vmem>>, vector<1x16xf32>
      %100 = math.log %99 : vector<1x16xf32>
      %101 = arith.addf %98, %100 : vector<1x16xf32>
      %c0_41 = arith.constant 0 : index
      %102 = memref.load %arg12[%c0_41] : memref<3xf32, #tpu.memory_space<smem>>
      %cst_42 = arith.constant 1.600000e+01 : f32
      %103 = arith.divf %102, %cst_42 : f32
      %104 = vector.shape_cast %101 : vector<1x16xf32> to vector<1x1x16xf32>
      %cst_43 = arith.constant dense<0.000000e+00> : vector<1xf32>
      %105 = vector.multi_reduction <add>, %104, %cst_43 [1, 2] : vector<1x1x16xf32> to vector<1xf32>
      %106 = vector.shape_cast %105 : vector<1xf32> to vector<1x1x1xf32>
      %107 = vector.extract %106[0, 0, 0] : f32 from vector<1x1x1xf32>
      %c1_44 = arith.constant 1 : index
      %108 = memref.load %arg12[%c1_44] : memref<3xf32, #tpu.memory_space<smem>>
      %109 = arith.subf %107, %108 : f32
      %cst_45 = arith.constant 1.600000e+01 : f32
      %110 = arith.divf %109, %cst_45 : f32
      %111 = arith.addf %103, %110 : f32
      %cst_46 = arith.constant 5.000000e-01 : f32
      %112 = arith.mulf %cst_46, %111 : f32
      %c0_47 = arith.constant 0 : index
      %113 = memref.load %arg7[%c0_47] : memref<1xf32, #tpu.memory_space<smem>>
      memref.store %112, %arg7[%c0_47] : memref<1xf32, #tpu.memory_space<smem>>
      %c2_48 = arith.constant 2 : index
      %114 = memref.load %arg12[%c2_48] : memref<3xf32, #tpu.memory_space<smem>>
      %cst_49 = arith.constant 1.600000e+01 : f32
      %115 = arith.divf %114, %cst_49 : f32
      %c0_50 = arith.constant 0 : index
      %116 = memref.load %arg8[%c0_50] : memref<1xf32, #tpu.memory_space<smem>>
      memref.store %115, %arg8[%c0_50] : memref<1xf32, #tpu.memory_space<smem>>
    } else {
    }
    return
  }
  func.func @transform_0(%arg0: i32) -> (i32, i32) {
    %c0_i32 = arith.constant 0 : i32
    %c0_i32_0 = arith.constant 0 : i32
    return %arg0, %c0_i32 : i32, i32
  }
  func.func @transform_1(%arg0: i32) -> (i32, i32) {
    %c0_i32 = arith.constant 0 : i32
    %c0_i32_0 = arith.constant 0 : i32
    %c0_i32_1 = arith.constant 0 : i32
    return %c0_i32, %c0_i32_0 : i32, i32
  }
  func.func @transform_2(%arg0: i32) -> (i32, i32) {
    %c0_i32 = arith.constant 0 : i32
    %c0_i32_0 = arith.constant 0 : i32
    %c0_i32_1 = arith.constant 0 : i32
    return %c0_i32, %c0_i32_0 : i32, i32
  }
  func.func @transform_3(%arg0: i32) -> (i32, i32) {
    %c0_i32 = arith.constant 0 : i32
    %c0_i32_0 = arith.constant 0 : i32
    %c0_i32_1 = arith.constant 0 : i32
    return %c0_i32, %c0_i32_0 : i32, i32
  }
  func.func @transform_4(%arg0: i32) -> (i32, i32) {
    %c0_i32 = arith.constant 0 : i32
    %c0_i32_0 = arith.constant 0 : i32
    %c0_i32_1 = arith.constant 0 : i32
    return %c0_i32, %c0_i32_0 : i32, i32
  }
  func.func @transform_5(%arg0: i32) -> (i32, i32) {
    %c0_i32 = arith.constant 0 : i32
    %c0_i32_0 = arith.constant 0 : i32
    %c0_i32_1 = arith.constant 0 : i32
    return %c0_i32, %c0_i32_0 : i32, i32
  }
  func.func @transform_6(%arg0: i32) -> i32 {
    %c0_i32 = arith.constant 0 : i32
    %c0_i32_0 = arith.constant 0 : i32
    return %c0_i32 : i32
  }
  func.func @transform_7(%arg0: i32) -> i32 {
    %c0_i32 = arith.constant 0 : i32
    %c0_i32_0 = arith.constant 0 : i32
    return %c0_i32 : i32
  }
}

</mosaic_0001>

<llo_original>
// kernel: tpu_custom_call.1
$region0: #{tpu_custom_call.1}
  #allocation0 [shape = 'u32[]', space=smem, size = 0x4, offset = 0x4, fixed_abs, tag = 'smem constant byte address 0x4 - core index']
  #allocation1 [shape = 'u32[144,128]{1,0:T(1,128)}', space=vmem, size = 0x12000, scoped, tag = 'internal scratch']
  #allocation2 [shape = 'f32[16,16]{1,0:T(8,128)}', space=vmem, size = 0x2000, scoped, tag = 'scratch operand']
  #allocation3 [shape = 'f32[1,16]{1,0:T(1,128)}', space=vmem, size = 0x200, scoped, tag = 'scratch operand']
  #allocation4 [shape = 'f32[1,16]{1,0:T(1,128)}', space=vmem, size = 0x200, scoped, tag = 'scratch operand']
  #allocation5 [shape = 'f32[3]{0:T(128)}', space=smem, size = 0x200, scoped, tag = 'scratch operand']
  %s0 = inlined_call_operand.vmem [shape: f32[16,32], index: 0, kind: input, shape index: {}]
  %s1 = inlined_call_operand.vmem [shape: f32[16,48], index: 1, kind: input, shape index: {}]
  %s2 = inlined_call_operand.vmem [shape: f32[32,16], index: 2, kind: input, shape index: {}]
  %s3 = inlined_call_operand.vmem [shape: f32[1,16], index: 3, kind: input, shape index: {}]
  %s4 = inlined_call_operand.vmem [shape: f32[48,16], index: 4, kind: input, shape index: {}]
  %s5 = inlined_call_operand.vmem [shape: f32[1,16], index: 5, kind: input, shape index: {}]
  %s6 = inlined_call_operand.hbm [shape: f32[1], index: 6, kind: output, shape index: {0}]
  %s7 = inlined_call_operand.hbm [shape: f32[1], index: 7, kind: output, shape index: {1}]
  %8 = xla_tuple %s6, %s7
  %s9 = sld [smem:[#allocation0]]
  $region73: #{tpu_custom_call.1} parent=0
    _
  %s11 = ssub.s32 1, %s9
  %s12 = scalar_select 0, %s11, %s9
  $region1: #{tpu_custom_call.1} parent=0
    #allocation6 [shape = 'u8[512]{0}', space=smem, size = 0x200, scoped, tag = 'output window, operand 0, single buffered']
    #allocation7 [shape = 's32[2]{0}', space=sflag, size = 0x8, scoped, tag = 'scoped memory for tpu_custom_call.1']
    #allocation8 [shape = 'u8[512]{0}', space=smem, size = 0x200, scoped, tag = 'output window, operand 1, single buffered']
    #allocation9 [shape = 's32[1]{0}', space=sflag, size = 0x4, scoped, tag = 'scoped memory for tpu_custom_call.1']
    %13 = vsyncpa [#allocation7], 0
    %14 = vsyncpa [#allocation9], 0
    loop: start=0, step=1, limit=4
    $region2: #{tpu_custom_call.1} parent=1 // loop_pre_header
      _
    $region3: #{tpu_custom_call.1} parent=1 // loop_header
      %s16 = sphi 0, %s20
      %p17 = scmp.ge.s32.totalorder %s16, 4
      %s26 = sphi 0, %s28
      %s29 = sphi 0, %s26
      %s30 = sphi 0, %s29
      %s46 = sphi 0, %s30
      %s50 = sphi 0, %s50
      %s52 = sphi 0, %s50
      %s53 = sphi 0, %s52
      %s67 = sphi 0, %s53
      %s71 = sphi 0, %s71
      %s73 = sphi 0, %s71
      %s74 = sphi 0, %s73
      %s88 = sphi 0, %s74
      %s92 = sphi 0, %s92
      %s94 = sphi 0, %s92
      %s95 = sphi 0, %s94
      %s109 = sphi 0, %s95
      %s113 = sphi 0, %s113
      %s115 = sphi 0, %s113
      %s116 = sphi 0, %s115
      %s130 = sphi 0, %s116
      %s134 = sphi 0, %s134
      %s136 = sphi 0, %s134
      %s137 = sphi 0, %s136
      %s151 = sphi 0, %s137
      %s155 = sphi 0, %s155
      %s157 = sphi 0, %s155
      %s158 = sphi 0, %s157
      %s172 = sphi 0, %s158
      %s176 = sphi 0, %s176
      %s178 = sphi 0, %s176
      %s179 = sphi 0, %s178
      %s193 = sphi 0, %s179
    $region4: #{tpu_custom_call.1} parent=1 // loop_header_branch
      %19 = sbr.rel (%p17) target = $region8
    $region5: #{tpu_custom_call.1} parent=1 // loop_body
      %s21 = ssub.s32 %s16, 1
      %s22 = ssub.s32 %s16, 2
      %s23 = sadd.s32 %s16, 1
      %s24 = ssub.s32 %s16, %s23
      %p25 = scmp.eq.s32.totalorder %s24, 0
      %s27 = sadd.s32 %s26, 1
      %s28 = scalar_select %p25, %s26, %s27
      %p31 = pneg %p25
      %p32 = scmp.eq.s32.totalorder %s16, 1
      %p33 = por %p31, %p32
      %p34 = scmp.ne.s32.totalorder %s26, %s29
      %p35 = scmp.eq.s32.totalorder %s16, 0
      %p36 = por %p34, %p35
      %p37 = scmp.ne.s32.totalorder %s26, %s29
      %p38 = scmp.eq.s32.totalorder %s21, 1
      %p39 = por %p37, %p38
      %p40 = scmp.ne.s32.totalorder %s29, %s30
      %p41 = scmp.eq.s32.totalorder %s21, 0
      %p42 = por %p40, %p41
      %p43 = scmp.ne.s32.totalorder %s29, %s30
      %p44 = scmp.eq.s32.totalorder %s22, 1
      %p45 = por %p43, %p44
      %p47 = scmp.ne.s32.totalorder %s30, %s46
      %p48 = scmp.eq.s32.totalorder %s22, 0
      %p49 = por %p47, %p48
      %s51 = sadd.s32 %s50, 1
      %p54 = scmp.eq.s32.totalorder %s16, 1
      %p55 = scmp.ne.s32.totalorder %s50, %s52
      %p56 = scmp.eq.s32.totalorder %s16, 0
      %p57 = por %p55, %p56
      %p58 = scmp.ne.s32.totalorder %s50, %s52
      %p59 = scmp.eq.s32.totalorder %s21, 1
      %p60 = por %p58, %p59
      %p61 = scmp.ne.s32.totalorder %s52, %s53
      %p62 = scmp.eq.s32.totalorder %s21, 0
      %p63 = por %p61, %p62
      %p64 = scmp.ne.s32.totalorder %s52, %s53
      %p65 = scmp.eq.s32.totalorder %s22, 1
      %p66 = por %p64, %p65
      %p68 = scmp.ne.s32.totalorder %s53, %s67
      %p69 = scmp.eq.s32.totalorder %s22, 0
      %p70 = por %p68, %p69
      %s72 = sadd.s32 %s71, 1
      %p75 = scmp.eq.s32.totalorder %s16, 1
      %p76 = scmp.ne.s32.totalorder %s71, %s73
      %p77 = scmp.eq.s32.totalorder %s16, 0
      %p78 = por %p76, %p77
      %p79 = scmp.ne.s32.totalorder %s71, %s73
      %p80 = scmp.eq.s32.totalorder %s21, 1
      %p81 = por %p79, %p80
      %p82 = scmp.ne.s32.totalorder %s73, %s74
      %p83 = scmp.eq.s32.totalorder %s21, 0
      %p84 = por %p82, %p83
      %p85 = scmp.ne.s32.totalorder %s73, %s74
      %p86 = scmp.eq.s32.totalorder %s22, 1
      %p87 = por %p85, %p86
      %p89 = scmp.ne.s32.totalorder %s74, %s88
      %p90 = scmp.eq.s32.totalorder %s22, 0
      %p91 = por %p89, %p90
      %s93 = sadd.s32 %s92, 1
      %p96 = scmp.eq.s32.totalorder %s16, 1
      %p97 = scmp.ne.s32.totalorder %s92, %s94
      %p98 = scmp.eq.s32.totalorder %s16, 0
      %p99 = por %p97, %p98
      %p100 = scmp.ne.s32.totalorder %s92, %s94
      %p101 = scmp.eq.s32.totalorder %s21, 1
      %p102 = por %p100, %p101
      %p103 = scmp.ne.s32.totalorder %s94, %s95
      %p104 = scmp.eq.s32.totalorder %s21, 0
      %p105 = por %p103, %p104
      %p106 = scmp.ne.s32.totalorder %s94, %s95
      %p107 = scmp.eq.s32.totalorder %s22, 1
      %p108 = por %p106, %p107
      %p110 = scmp.ne.s32.totalorder %s95, %s109
      %p111 = scmp.eq.s32.totalorder %s22, 0
      %p112 = por %p110, %p111
      %s114 = sadd.s32 %s113, 1
      %p117 = scmp.eq.s32.totalorder %s16, 1
      %p118 = scmp.ne.s32.totalorder %s113, %s115
      %p119 = scmp.eq.s32.totalorder %s16, 0
      %p120 = por %p118, %p119
      %p121 = scmp.ne.s32.totalorder %s113, %s115
      %p122 = scmp.eq.s32.totalorder %s21, 1
      %p123 = por %p121, %p122
      %p124 = scmp.ne.s32.totalorder %s115, %s116
      %p125 = scmp.eq.s32.totalorder %s21, 0
      %p126 = por %p124, %p125
      %p127 = scmp.ne.s32.totalorder %s115, %s116
      %p128 = scmp.eq.s32.totalorder %s22, 1
      %p129 = por %p127, %p128
      %p131 = scmp.ne.s32.totalorder %s116, %s130
      %p132 = scmp.eq.s32.totalorder %s22, 0
      %p133 = por %p131, %p132
      %s135 = sadd.s32 %s134, 1
      %p138 = scmp.eq.s32.totalorder %s16, 1
      %p139 = scmp.ne.s32.totalorder %s134, %s136
      %p140 = scmp.eq.s32.totalorder %s16, 0
      %p141 = por %p139, %p140
      %p142 = scmp.ne.s32.totalorder %s134, %s136
      %p143 = scmp.eq.s32.totalorder %s21, 1
      %p144 = por %p142, %p143
      %p145 = scmp.ne.s32.totalorder %s136, %s137
      %p146 = scmp.eq.s32.totalorder %s21, 0
      %p147 = por %p145, %p146
      %p148 = scmp.ne.s32.totalorder %s136, %s137
      %p149 = scmp.eq.s32.totalorder %s22, 1
      %p150 = por %p148, %p149
      %p152 = scmp.ne.s32.totalorder %s137, %s151
      %p153 = scmp.eq.s32.totalorder %s22, 0
      %p154 = por %p152, %p153
      %s156 = sadd.s32 %s155, 1
      %p159 = scmp.eq.s32.totalorder %s16, 1
      %p160 = scmp.ne.s32.totalorder %s155, %s157
      %p161 = scmp.eq.s32.totalorder %s16, 0
      %p162 = por %p160, %p161
      %p163 = scmp.ne.s32.totalorder %s155, %s157
      %p164 = scmp.eq.s32.totalorder %s21, 1
      %p165 = por %p163, %p164
      %p166 = scmp.ne.s32.totalorder %s157, %s158
      %p167 = scmp.eq.s32.totalorder %s21, 0
      %p168 = por %p166, %p167
      %p169 = scmp.ne.s32.totalorder %s157, %s158
      %p170 = scmp.eq.s32.totalorder %s22, 1
      %p171 = por %p169, %p170
      %p173 = scmp.ne.s32.totalorder %s158, %s172
      %p174 = scmp.eq.s32.totalorder %s22, 0
      %p175 = por %p173, %p174
      %s177 = sadd.s32 %s176, 1
      %p180 = scmp.eq.s32.totalorder %s16, 1
      %p181 = scmp.ne.s32.totalorder %s176, %s178
      %p182 = scmp.eq.s32.totalorder %s16, 0
      %p183 = por %p181, %p182
      %p184 = scmp.ne.s32.totalorder %s176, %s178
      %p185 = scmp.eq.s32.totalorder %s21, 1
      %p186 = por %p184, %p185
      %p187 = scmp.ne.s32.totalorder %s178, %s179
      %p188 = scmp.eq.s32.totalorder %s21, 0
      %p189 = por %p187, %p188
      %p190 = scmp.ne.s32.totalorder %s178, %s179
      %p191 = scmp.eq.s32.totalorder %s22, 1
      %p192 = por %p190, %p191
      %p194 = scmp.ne.s32.totalorder %s179, %s193
      %p195 = scmp.eq.s32.totalorder %s22, 0
      %p196 = por %p194, %p195
      %p197 = scmp.le.s32.totalorder 1, %s16
      %p198 = scmp.lt.s32.totalorder %s16, 3
      %p199 = pnand %p197, %p198
      %p200 = pneg %p199
      // Predicated region
      $region9: #{tpu_custom_call.1} parent=5 // pred_check
        _
      $region10: #{tpu_custom_call.1} parent=5 // pred_check_branch
        %202 = sbr.rel (%p199) target = $region12
      $region11: #{tpu_custom_call.1} parent=5 // pred_region
        %s203 = ssub.s32 %s16, 1
        // Predicated region
        $region13: #{tpu_custom_call.1} parent=11 // pred_check
          %p204 = pneg %p63
        $region14: #{tpu_custom_call.1} parent=11 // pred_check_branch
          %206 = sbr.rel (%p204) target = $region16
        $region15: #{tpu_custom_call.1} parent=11 // pred_region
          _
        $region16: #{tpu_custom_call.1} parent=11 // pred_fallthru
          _
        // Predicated region
        $region17: #{tpu_custom_call.1} parent=11 // pred_check
          %p207 = pneg %p84
        $region18: #{tpu_custom_call.1} parent=11 // pred_check_branch
          %209 = sbr.rel (%p207) target = $region20
        $region19: #{tpu_custom_call.1} parent=11 // pred_region
          _
        $region20: #{tpu_custom_call.1} parent=11 // pred_fallthru
          _
        // Predicated region
        $region21: #{tpu_custom_call.1} parent=11 // pred_check
          %p210 = pneg %p105
        $region22: #{tpu_custom_call.1} parent=11 // pred_check_branch
          %212 = sbr.rel (%p210) target = $region24
        $region23: #{tpu_custom_call.1} parent=11 // pred_region
          _
        $region24: #{tpu_custom_call.1} parent=11 // pred_fallthru
          _
        // Predicated region
        $region25: #{tpu_custom_call.1} parent=11 // pred_check
          %p213 = pneg %p126
        $region26: #{tpu_custom_call.1} parent=11 // pred_check_branch
          %215 = sbr.rel (%p213) target = $region28
        $region27: #{tpu_custom_call.1} parent=11 // pred_region
          _
        $region28: #{tpu_custom_call.1} parent=11 // pred_fallthru
          _
        // Predicated region
        $region29: #{tpu_custom_call.1} parent=11 // pred_check
          %p216 = pneg %p147
        $region30: #{tpu_custom_call.1} parent=11 // pred_check_branch
          %218 = sbr.rel (%p216) target = $region32
        $region31: #{tpu_custom_call.1} parent=11 // pred_region
          _
        $region32: #{tpu_custom_call.1} parent=11 // pred_fallthru
          _
      $region12: #{tpu_custom_call.1} parent=5 // pred_fallthru
        _
      %p219 = scmp.lt.s32.totalorder %s16, 2
      // Predicated region
      $region33: #{tpu_custom_call.1} parent=5 // pred_check
        %p220 = pneg %p219
      $region34: #{tpu_custom_call.1} parent=5 // pred_check_branch
        %222 = sbr.rel (%p220) target = $region36
      $region35: #{tpu_custom_call.1} parent=5 // pred_region
        // Predicated region
        $region37: #{tpu_custom_call.1} parent=35 // pred_check
          %p223 = pneg %p36
        $region38: #{tpu_custom_call.1} parent=35 // pred_check_branch
          %225 = sbr.rel (%p223) target = $region40
        $region39: #{tpu_custom_call.1} parent=35 // pred_region
          %p226 = scmp.lt.s32.totalorder %s16, 1
          %s227 = scalar_select %p226, %s16, 1
          %s228 = smul.addr %s227, 8
          %s229 = scalar_lea.vmem %s0, %s228
        $region40: #{tpu_custom_call.1} parent=35 // pred_fallthru
          _
      $region36: #{tpu_custom_call.1} parent=5 // pred_fallthru
        _
      %p230 = scmp.le.s32.totalorder 1, %s16
      %p231 = scmp.lt.s32.totalorder %s16, 3
      %p232 = pnand %p230, %p231
      %p233 = pneg %p232
      // Predicated region
      $region41: #{tpu_custom_call.1} parent=5 // pred_check
        _
      $region42: #{tpu_custom_call.1} parent=5 // pred_check_branch
        %235 = sbr.rel (%p232) target = $region44
      $region43: #{tpu_custom_call.1} parent=5 // pred_region
        %s236 = ssub.s32 %s16, 1
        %p237 = scmp.lt.s32.totalorder %s21, 1
        %s238 = scalar_select %p237, %s21, 1
        %s239 = smul.addr %s238, 8
        %s240 = scalar_lea.vmem %s0, %s239
        %p241 = pneg %p42
        %p242 = pneg %p39
        %p243 = pneg %p63
        %p244 = pneg %p60
        %p245 = pneg %p84
        %p246 = pneg %p81
        %p247 = pneg %p105
        %p248 = pneg %p102
        %p249 = pneg %p126
        %p250 = pneg %p123
        %p251 = pneg %p147
        %p252 = pneg %p144
        %p253 = pneg %p168
        %p254 = pneg %p165
        %p255 = pneg %p189
        %p256 = pneg %p186
        %p257 = scmp.lt.s32.totalorder %s21, 1
        %s258 = scalar_select %p257, %s21, 1
        %s259 = smul.addr %s258, 8
        %s260 = scalar_lea.vmem %s0, %s259
        %s261 = smul.u32 %s21, 8
        %p262 = scmp.eq.s32.totalorder %s21, 0
        // Predicated region
        $region45: #{tpu_custom_call.1} parent=43 // pred_check
          %p263 = pneg %p262
        $region46: #{tpu_custom_call.1} parent=43 // pred_check_branch
          %265 = sbr.rel (%p263) target = $region48
        $region47: #{tpu_custom_call.1} parent=43 // pred_region
          %v266 = vld [vmem:[%s1] sm:$0xff]
          %v267 = vld [vmem:[%s1 + $0x8] sm:$0xff]
          %v268 = vld [vmem:[%s4] sm:$0xff]
          %v269 = vld [vmem:[%s4 + $0x8] sm:$0xff]
          %v270 = vld [vmem:[%s4 + $0x10] sm:$0xff]
          %v271 = vld [vmem:[%s4 + $0x18] sm:$0xff]
          %v272 = vld [vmem:[%s4 + $0x20] sm:$0xff]
          %v273 = vld [vmem:[%s4 + $0x28] sm:$0xff]
          %v274 = vld [vmem:[%s5] sm:$0x1]
          %v276 = vlaneseq
          %v277 = vshrl.u32 %v276, 7
          %v278 = vsub.s32 0, %v277
          %v279 = vrot.slane %v274, %v278
          %vm281 = vcmask 392192
          %v283 = vsel %vm281, %v266, 0
          %v286 = vsel %vm281, %v267, 0
          %288 = vmatprep.subr.mxu0 0.0
          %289 = vmatpush1.msra.mxu0 %v268
          %290 = vmatprep.subr.mxu0 0.0
          %291 = vmatpush1.msra.mxu0 %v269
          %292 = vmatprep.subr.mxu0 0.0
          %293 = vmatpush1.msra.mxu0 %v270
          %294 = vmatprep.subr.mxu0 0.0
          %295 = vmatpush1.msra.mxu0 %v271
          %296 = vmatprep.subr.mxu0 0.0
          %297 = vmatpush1.msra.mxu0 %v272
          %298 = vmatprep.subr.mxu0 0.0
          %299 = vmatpush1.msra.mxu0 %v273
          %300 = vmatprep.subr.mxu0 0.0
          %301 = vmatpush1.msra.mxu0 0.0
          %302 = vmatprep.subr.mxu0 0.0
          %303 = vmatpush1.msra.mxu0 0.0
          %304 = vmatprep.subr.mxu0 0.0
          %305 = vmatpush1.msra.mxu0 0.0
          %306 = vmatprep.subr.mxu0 0.0
          %307 = vmatpush1.msra.mxu0 0.0
          %308 = vmatprep.subr.mxu0 0.0
          %309 = vmatpush1.msra.mxu0 0.0
          %310 = vmatprep.subr.mxu0 0.0
          %311 = vmatpush1.msra.mxu0 0.0
          %312 = vmatprep.subr.mxu0 0.0
          %313 = vmatpush1.msra.mxu0 0.0
          %314 = vmatprep.subr.mxu0 0.0
          %315 = vmatpush1.msra.mxu0 0.0
          %316 = vmatprep.subr.mxu0 0.0
          %317 = vmatpush1.msra.mxu0 0.0
          %318 = vmatprep.subr.mxu0 0.0
          %319 = vmatpush1.msra.mxu0 0.0
          %320 = vmatprep.subr.mxu0 0.0
          %321 = vmatpush1.msra.mxu0 0.0
          %322 = vmatprep.subr.mxu0 0.0
          %323 = vmatpush1.msra.mxu0 0.0
          %324 = vmatprep.subr.mxu0 0.0
          %325 = vmatpush1.msra.mxu0 0.0
          %326 = vmatprep.subr.mxu0 0.0
          %327 = vmatpush1.msra.mxu0 0.0
          %328 = vmatprep.subr.mxu0 0.0
          %329 = vmatpush1.msra.mxu0 0.0
          %330 = vmatprep.subr.mxu0 0.0
          %331 = vmatpush1.msra.mxu0 0.0
          %332 = vmatprep.subr.mxu0 0.0
          %333 = vmatpush1.msra.mxu0 0.0
          %334 = vmatprep.subr.mxu0 0.0
          %335 = vmatpush1.msra.mxu0 0.0
          %336 = vmatprep.subr.mxu0 0.0
          %337 = vmatpush1.msra.mxu0 0.0
          %338 = vmatprep.subr.mxu0 0.0
          %339 = vmatpush1.msra.mxu0 0.0
          %340 = vmatprep.subr.mxu0 0.0
          %341 = vmatpush1.msra.mxu0 0.0
          %342 = vmatprep.subr.mxu0 0.0
          %343 = vmatpush1.msra.mxu0 0.0
          %344 = vmatprep.subr.mxu0 0.0
          %345 = vmatpush1.msra.mxu0 0.0
          %346 = vmatprep.subr.mxu0 0.0
          %347 = vmatpush1.msra.mxu0 0.0
          %348 = vmatprep.subr.mxu0 0.0
          %349 = vmatpush1.msra.mxu0 0.0
          %350 = vmatprep.subr.mxu0 0.0
          %351 = vmatpush1.msra.mxu0 0.0
          %352 = vmatprep.mubr.f32.mxu0 0.0
          %353 = vmatmul.mubr.f32.gmra.mrb[0].mxu0 %v283
          %v354 = vpop.f32.mrb[0].mxu0
          %v355 = vadd.f32 %v279, %v354
          %v356 = vpop.f32.mrb[0].mxu0
          %357 = vmatprep.mubr.f32.mxu0 0.0
          %358 = vmatmul.mubr.f32.gmra.mrb[0].mxu0 %v286
          %v359 = vpop.f32.mrb[0].mxu0
          %v360 = vadd.f32 %v279, %v359
          %v361 = vpop.f32.mrb[0].mxu0
          %362 = vdwg.mxu0
          %vm363 = vcmask 130048
          %364 = vst.msk [vmem:[#allocation2] sm:$0xff] %vm363, %v355
          %365 = vst.msk [vmem:[#allocation2 + $0x8] sm:$0xff] %vm363, %v360
          %vm366 = vcmask 122880
          %367 = vst.msk [vmem:[#allocation3] sm:$0x1] %vm366, -inf
          %368 = vst.msk [vmem:[#allocation4] sm:$0x1] %vm366, 0.0
          %s369 = scalar_lea.smem [#allocation5], 0
          %370 = sst [smem:[%s369]] 0.0
          %s371 = scalar_lea.smem [#allocation5], 1
          %372 = sst [smem:[%s371]] 0.0
          %s373 = scalar_lea.smem [#allocation5], 2
          %374 = sst [smem:[%s373]] 0.0
        $region48: #{tpu_custom_call.1} parent=43 // pred_fallthru
          _
        %v375 = vld [vmem:[%s260] sm:$0xff]
        %v376 = vld [vmem:[%s2] sm:$0xff]
        %v377 = vld [vmem:[%s2 + $0x8] sm:$0xff]
        %v378 = vld [vmem:[%s2 + $0x10] sm:$0xff]
        %v379 = vld [vmem:[%s2 + $0x18] sm:$0xff]
        %v380 = vld [vmem:[%s3] sm:$0x1]
        %v382 = vlaneseq
        %v383 = vshrl.u32 %v382, 7
        %v384 = vsub.s32 0, %v383
        %v385 = vrot.slane %v380, %v384
        %vm387 = vcmask 261120
        %v389 = vsel %vm387, %v375, 0
        %391 = vmatprep.subr.mxu0 0.0
        %392 = vmatpush1.msra.mxu0 %v376
        %393 = vmatprep.subr.mxu0 0.0
        %394 = vmatpush1.msra.mxu0 %v377
        %395 = vmatprep.subr.mxu0 0.0
        %396 = vmatpush1.msra.mxu0 %v378
        %397 = vmatprep.subr.mxu0 0.0
        %398 = vmatpush1.msra.mxu0 %v379
        %399 = vmatprep.subr.mxu0 0.0
        %400 = vmatpush1.msra.mxu0 0.0
        %401 = vmatprep.subr.mxu0 0.0
        %402 = vmatpush1.msra.mxu0 0.0
        %403 = vmatprep.subr.mxu0 0.0
        %404 = vmatpush1.msra.mxu0 0.0
        %405 = vmatprep.subr.mxu0 0.0
        %406 = vmatpush1.msra.mxu0 0.0
        %407 = vmatprep.subr.mxu0 0.0
        %408 = vmatpush1.msra.mxu0 0.0
        %409 = vmatprep.subr.mxu0 0.0
        %410 = vmatpush1.msra.mxu0 0.0
        %411 = vmatprep.subr.mxu0 0.0
        %412 = vmatpush1.msra.mxu0 0.0
        %413 = vmatprep.subr.mxu0 0.0
        %414 = vmatpush1.msra.mxu0 0.0
        %415 = vmatprep.subr.mxu0 0.0
        %416 = vmatpush1.msra.mxu0 0.0
        %417 = vmatprep.subr.mxu0 0.0
        %418 = vmatpush1.msra.mxu0 0.0
        %419 = vmatprep.subr.mxu0 0.0
        %420 = vmatpush1.msra.mxu0 0.0
        %421 = vmatprep.subr.mxu0 0.0
        %422 = vmatpush1.msra.mxu0 0.0
        %423 = vmatprep.subr.mxu0 0.0
        %424 = vmatpush1.msra.mxu0 0.0
        %425 = vmatprep.subr.mxu0 0.0
        %426 = vmatpush1.msra.mxu0 0.0
        %427 = vmatprep.subr.mxu0 0.0
        %428 = vmatpush1.msra.mxu0 0.0
        %429 = vmatprep.subr.mxu0 0.0
        %430 = vmatpush1.msra.mxu0 0.0
        %431 = vmatprep.subr.mxu0 0.0
        %432 = vmatpush1.msra.mxu0 0.0
        %433 = vmatprep.subr.mxu0 0.0
        %434 = vmatpush1.msra.mxu0 0.0
        %435 = vmatprep.subr.mxu0 0.0
        %436 = vmatpush1.msra.mxu0 0.0
        %437 = vmatprep.subr.mxu0 0.0
        %438 = vmatpush1.msra.mxu0 0.0
        %439 = vmatprep.subr.mxu0 0.0
        %440 = vmatpush1.msra.mxu0 0.0
        %441 = vmatprep.subr.mxu0 0.0
        %442 = vmatpush1.msra.mxu0 0.0
        %443 = vmatprep.subr.mxu0 0.0
        %444 = vmatpush1.msra.mxu0 0.0
        %445 = vmatprep.subr.mxu0 0.0
        %446 = vmatpush1.msra.mxu0 0.0
        %447 = vmatprep.subr.mxu0 0.0
        %448 = vmatpush1.msra.mxu0 0.0
        %449 = vmatprep.subr.mxu0 0.0
        %450 = vmatpush1.msra.mxu0 0.0
        %451 = vmatprep.subr.mxu0 0.0
        %452 = vmatpush1.msra.mxu0 0.0
        %453 = vmatprep.subr.mxu0 0.0
        %454 = vmatpush1.msra.mxu0 0.0
        %455 = vmatprep.mubr.f32.mxu0 0.0
        %456 = vmatmul.mubr.f32.gmra.mrb[0].mxu0 %v389
        %v457 = vpop.f32.mrb[0].mxu0
        %v458 = vadd.f32 %v385, %v457
        %v459 = vpop.f32.mrb[0].mxu0
        %460 = vdwg.mxu0
        %v461 = vld [vmem:[#allocation2] sm:$0xff]
        %v462 = vld [vmem:[#allocation2 + $0x8] sm:$0xff]
        %vm463 = vcmask 130048
        %v465 = vsel %vm463, %v458, 0
        %v468 = vsel %vm463, %v461, 0
        %v471 = vsel %vm463, %v462, 0
        %473 = vmatprep.subr.mxu0 0.0
        %474 = vmatpush1.xpose.msra.mxu0 %v468
        %475 = vmatprep.subr.mxu0 0.0
        %476 = vmatpush1.xpose.msra.mxu0 %v471
        %477 = vmatprep.subr.mxu0 0.0
        %478 = vmatpush1.xpose.msra.mxu0 0.0
        %479 = vmatprep.subr.mxu0 0.0
        %480 = vmatpush1.xpose.msra.mxu0 0.0
        %481 = vmatprep.subr.mxu0 0.0
        %482 = vmatpush1.xpose.msra.mxu0 0.0
        %483 = vmatprep.subr.mxu0 0.0
        %484 = vmatpush1.xpose.msra.mxu0 0.0
        %485 = vmatprep.subr.mxu0 0.0
        %486 = vmatpush1.xpose.msra.mxu0 0.0
        %487 = vmatprep.subr.mxu0 0.0
        %488 = vmatpush1.xpose.msra.mxu0 0.0
        %489 = vmatprep.subr.mxu0 0.0
        %490 = vmatpush1.xpose.msra.mxu0 0.0
        %491 = vmatprep.subr.mxu0 0.0
        %492 = vmatpush1.xpose.msra.mxu0 0.0
        %493 = vmatprep.subr.mxu0 0.0
        %494 = vmatpush1.xpose.msra.mxu0 0.0
        %495 = vmatprep.subr.mxu0 0.0
        %496 = vmatpush1.xpose.msra.mxu0 0.0
        %497 = vmatprep.subr.mxu0 0.0
        %498 = vmatpush1.xpose.msra.mxu0 0.0
        %499 = vmatprep.subr.mxu0 0.0
        %500 = vmatpush1.xpose.msra.mxu0 0.0
        %501 = vmatprep.subr.mxu0 0.0
        %502 = vmatpush1.xpose.msra.mxu0 0.0
        %503 = vmatprep.subr.mxu0 0.0
        %504 = vmatpush1.xpose.msra.mxu0 0.0
        %505 = vmatprep.subr.mxu0 0.0
        %506 = vmatpush1.xpose.msra.mxu0 0.0
        %507 = vmatprep.subr.mxu0 0.0
        %508 = vmatpush1.xpose.msra.mxu0 0.0
        %509 = vmatprep.subr.mxu0 0.0
        %510 = vmatpush1.xpose.msra.mxu0 0.0
        %511 = vmatprep.subr.mxu0 0.0
        %512 = vmatpush1.xpose.msra.mxu0 0.0
        %513 = vmatprep.subr.mxu0 0.0
        %514 = vmatpush1.xpose.msra.mxu0 0.0
        %515 = vmatprep.subr.mxu0 0.0
        %516 = vmatpush1.xpose.msra.mxu0 0.0
        %517 = vmatprep.subr.mxu0 0.0
        %518 = vmatpush1.xpose.msra.mxu0 0.0
        %519 = vmatprep.subr.mxu0 0.0
        %520 = vmatpush1.xpose.msra.mxu0 0.0
        %521 = vmatprep.subr.mxu0 0.0
        %522 = vmatpush1.xpose.msra.mxu0 0.0
        %523 = vmatprep.subr.mxu0 0.0
        %524 = vmatpush1.xpose.msra.mxu0 0.0
        %525 = vmatprep.subr.mxu0 0.0
        %526 = vmatpush1.xpose.msra.mxu0 0.0
        %527 = vmatprep.subr.mxu0 0.0
        %528 = vmatpush1.xpose.msra.mxu0 0.0
        %529 = vmatprep.subr.mxu0 0.0
        %530 = vmatpush1.xpose.msra.mxu0 0.0
        %531 = vmatprep.subr.mxu0 0.0
        %532 = vmatpush1.xpose.msra.mxu0 0.0
        %533 = vmatprep.subr.mxu0 0.0
        %534 = vmatpush1.xpose.msra.mxu0 0.0
        %535 = vmatprep.subr.mxu0 0.0
        %536 = vmatpush1.xpose.msra.mxu0 0.0
        %537 = vmatprep.mubr.f32.mxu0 0.0
        %538 = vmatmul.mubr.f32.gmra.mrb[0].mxu0 %v465
        %v539 = vpop.f32.mrb[0].mxu0
        %v540 = vadd.f32 0.0, %v539
        %v541 = vpop.f32.mrb[0].mxu0
        %542 = vdwg.mxu0
        %s543 = scalar_lea.vmem [#allocation2], %s261
        %v544 = vld [vmem:[%s543] sm:$0xff]
        %v545 = vmul.f32 %v458, %v544
        %v546 = vsel %vm463, %v545, 0.0
        %547 = vadd.xlane.f32.xlu0 %v546
        %v548 = vpop.xlane.xlu0 %547
        %v549 = vsel %vm463, %v540, -inf
        %550 = vmax.xlane.f32.xlu0 %v549
        %v551 = vpop.xlane.xlu0 %550
        %v552 = vsub.f32 %v540, %v551
        %v553 = vmul.f32 %v552, 1.442695
        %v554 = vpow.pop %v553
        %v555 = vsel %vm463, %v554, 0.0
        %556 = vadd.xlane.f32.xlu0 %v555
        %v557 = vpop.xlane.xlu0 %556
        %v558 = vlog2.pop %v557
        %v559 = vmul.f32 %v558, 0.6931472
        %v560 = vadd.f32 %v551, %v559
        %v561 = vlaneseq
        %v562 = vand.u32 %v561, 127
        %v563 = vlaneseq
        %v564 = vshrl.u32 %v563, 7
        %v565 = vstv %s261
        %v566 = vadd.s32 %v565, %v564
        %vm567 = vcmp.gt.f32.partialorder %v540, %v548
        %vm568 = vcmp.ne.s32.totalorder %v562, %v566
        %vm569 = vmand %vm567, %vm568
        %v570 = vsel %vm569, 1, 0
        %v571 = vcvt.s32.f32 %v570
        %v572 = vsel %vm463, %v571, 0.0
        %573 = vadd.xlane.f32.xlu0 %v572
        %v574 = vpop.xlane.xlu0 %573
        %v575 = vrot.slane %v551, 4
        %v576 = vmax.f32 %v551, %v575
        %v577 = vrot.slane %v576, 2
        %v578 = vmax.f32 %v576, %v577
        %v579 = vrot.slane %v578, 1
        %v580 = vmax.f32 %v578, %v579
        %s581 = vtos %v580
        %v582 = vstv %s581
        %v583 = vsub.f32 %v551, %v582
        %v584 = vmul.f32 %v583, 1.442695
        %v585 = vpow.pop %v584
        %v586 = vmul.f32 %v554, %v585
        %v587 = vsel %vm463, %v586, 0.0
        %v588 = vrot.slane %v587, 4
        %v589 = vadd.f32 %v587, %v588
        %v590 = vrot.slane %v589, 2
        %v591 = vadd.f32 %v589, %v590
        %v592 = vrot.slane %v591, 1
        %v593 = vadd.f32 %v591, %v592
        %v594 = vld [vmem:[#allocation3] sm:$0x1]
        %v595 = vmax.f32 %v594, %v582
        %v596 = vld [vmem:[#allocation4] sm:$0x1]
        %v597 = vsub.f32 %v594, %v595
        %v598 = vmul.f32 %v597, 1.442695
        %v599 = vpow.pop %v598
        %v600 = vmul.f32 %v596, %v599
        %v601 = vsub.f32 %v582, %v595
        %v602 = vmul.f32 %v601, 1.442695
        %v603 = vpow.pop %v602
        %v604 = vmul.f32 %v593, %v603
        %v605 = vadd.f32 %v600, %v604
        %vm606 = vcmask 122880
        %607 = vst.msk [vmem:[#allocation4] sm:$0x1] %vm606, %v605
        %608 = vst.msk [vmem:[#allocation3] sm:$0x1] %vm606, %v595
        %s609 = sld [smem:[#allocation5]]
        %v610 = vsub.f32 %v560, %v548
        %vm611 = vcmask 7168
        %v612 = vsel %vm611, %v610, 0.0
        %613 = vadd.xlane.f32.xlu0 %v612
        %v614 = vpop.xlane.xlu0 %613
        %v615 = vrot.slane %v614, 4
        %v616 = vadd.f32 %v614, %v615
        %v617 = vrot.slane %v616, 2
        %v618 = vadd.f32 %v616, %v617
        %v619 = vrot.slane %v618, 1
        %v620 = vadd.f32 %v618, %v619
        %s621 = vtos %v620
        %s622 = sadd.f32 %s609, %s621
        %s623 = scalar_lea.smem [#allocation5], 0
        %624 = sst [smem:[%s623]] %s622
        %s625 = sld [smem:[#allocation5 + $0x1]]
        %v626 = vsel %vm611, %v548, 0.0
        %627 = vadd.xlane.f32.xlu0 %v626
        %v628 = vpop.xlane.xlu0 %627
        %v629 = vrot.slane %v628, 4
        %v630 = vadd.f32 %v628, %v629
        %v631 = vrot.slane %v630, 2
        %v632 = vadd.f32 %v630, %v631
        %v633 = vrot.slane %v632, 1
        %v634 = vadd.f32 %v632, %v633
        %s635 = vtos %v634
        %s636 = sadd.f32 %s625, %s635
        %s637 = scalar_lea.smem [#allocation5], 1
        %638 = sst [smem:[%s637]] %s636
        %s639 = sld [smem:[#allocation5 + $0x2]]
        %vm640 = vcmp.lt.f32.partialorder %v574, 1.0
        %v641 = vsel %vm640, 1, 0
        %v642 = vcvt.s32.f32 %v641
        %v643 = vsel %vm611, %v642, 0.0
        %644 = vadd.xlane.f32.xlu0 %v643
        %v645 = vpop.xlane.xlu0 %644
        %v646 = vrot.slane %v645, 4
        %v647 = vadd.f32 %v645, %v646
        %v648 = vrot.slane %v647, 2
        %v649 = vadd.f32 %v647, %v648
        %v650 = vrot.slane %v649, 1
        %v651 = vadd.f32 %v649, %v650
        %s652 = vtos %v651
        %s653 = sadd.f32 %s639, %s652
        %s654 = scalar_lea.smem [#allocation5], 2
        %655 = sst [smem:[%s654]] %s653
        %p656 = scmp.eq.s32.totalorder %s21, 1
        // Predicated region
        $region49: #{tpu_custom_call.1} parent=43 // pred_check
          %p657 = pneg %p656
        $region50: #{tpu_custom_call.1} parent=43 // pred_check_branch
          %659 = sbr.rel (%p657) target = $region52
        $region51: #{tpu_custom_call.1} parent=43 // pred_region
          %v660 = vld [vmem:[#allocation3] sm:$0x1]
          %v661 = vld [vmem:[#allocation4] sm:$0x1]
          %v662 = vlog2.pop %v661
          %v663 = vmul.f32 %v662, 0.6931472
          %v664 = vadd.f32 %v660, %v663
          %s665 = sld [smem:[#allocation5]]
          %v666 = vrcp.pop 16.0
          %s667 = vtos %v666
          %s668 = smul.f32 %s665, %s667
          %v669 = vsel %vm606, %v664, 0.0
          %670 = vadd.xlane.f32.xlu0 %v669
          %v671 = vpop.xlane.xlu0 %670
          %v672 = vrot.slane %v671, 4
          %v673 = vadd.f32 %v671, %v672
          %v674 = vrot.slane %v673, 2
          %v675 = vadd.f32 %v673, %v674
          %v676 = vrot.slane %v675, 1
          %v677 = vadd.f32 %v675, %v676
          %s678 = vtos %v677
          %s679 = sld [smem:[#allocation5 + $0x1]]
          %s680 = ssub.f32 %s678, %s679
          %v681 = vrcp.pop 16.0
          %s682 = vtos %v681
          %s683 = smul.f32 %s680, %s682
          %s684 = sadd.f32 %s668, %s683
          %s685 = smul.f32 %s684, 0.5
          %s686 = scalar_lea.smem [#allocation6], 0
          %687 = sst [smem:[%s686]] %s685
          %s688 = sld [smem:[#allocation5 + $0x2]]
          %v689 = vrcp.pop 16.0
          %s690 = vtos %v689
          %s691 = smul.f32 %s688, %s690
          %s692 = scalar_lea.smem [#allocation8], 0
          %693 = sst [smem:[%s692]] %s691
        $region52: #{tpu_custom_call.1} parent=43 // pred_fallthru
          _
        // Predicated region
        $region53: #{tpu_custom_call.1} parent=43 // pred_check
          %p694 = pneg %p165
        $region54: #{tpu_custom_call.1} parent=43 // pred_check_branch
          %696 = sbr.rel (%p694) target = $region56
        $region55: #{tpu_custom_call.1} parent=43 // pred_region
          %s698 = ssub.s32 16, 16
          %699 = vsyncadd [#allocation7], %s698
          %702 = dma.smem_to_hbm [#allocation6], 16, %s6, [#allocation7]
        $region56: #{tpu_custom_call.1} parent=43 // pred_fallthru
          _
        // Predicated region
        $region57: #{tpu_custom_call.1} parent=43 // pred_check
          %p703 = pneg %p186
        $region58: #{tpu_custom_call.1} parent=43 // pred_check_branch
          %705 = sbr.rel (%p703) target = $region60
        $region59: #{tpu_custom_call.1} parent=43 // pred_region
          %s707 = ssub.s32 16, 16
          %708 = vsyncadd [#allocation9], %s707
          %711 = dma.smem_to_hbm [#allocation8], 16, %s7, [#allocation9]
        $region60: #{tpu_custom_call.1} parent=43 // pred_fallthru
          _
        // Predicated region
        $region61: #{tpu_custom_call.1} parent=43 // pred_check
          %p712 = pneg %p165
        $region62: #{tpu_custom_call.1} parent=43 // pred_check_branch
          %714 = sbr.rel (%p712) target = $region64
        $region63: #{tpu_custom_call.1} parent=43 // pred_region
          %715 = dma.done [#allocation7], 16
        $region64: #{tpu_custom_call.1} parent=43 // pred_fallthru
          _
        // Predicated region
        $region65: #{tpu_custom_call.1} parent=43 // pred_check
          %p716 = pneg %p186
        $region66: #{tpu_custom_call.1} parent=43 // pred_check_branch
          %718 = sbr.rel (%p716) target = $region68
        $region67: #{tpu_custom_call.1} parent=43 // pred_region
          %719 = dma.done [#allocation9], 16
        $region68: #{tpu_custom_call.1} parent=43 // pred_fallthru
          _
        %720 = sfence
      $region44: #{tpu_custom_call.1} parent=5 // pred_fallthru
        _
      %p721 = scmp.le.s32.totalorder 2, %s16
      // Predicated region
      $region69: #{tpu_custom_call.1} parent=5 // pred_check
        %p722 = pneg %p721
      $region70: #{tpu_custom_call.1} parent=5 // pred_check_branch
        %724 = sbr.rel (%p722) target = $region72
      $region71: #{tpu_custom_call.1} parent=5 // pred_region
        %s725 = ssub.s32 %s16, 2
      $region72: #{tpu_custom_call.1} parent=5 // pred_fallthru
        _
    $region6: #{tpu_custom_call.1} parent=1 // loop_footer
      %s20 = sadd.s32 1, %s16
    $region7: #{tpu_custom_call.1} parent=1 // loop_footer_branch
      %15 = sbr.rel target = $region3
    $region8: #{tpu_custom_call.1} parent=1 // loop_exit
      _
    %726 = vsyncpa [#allocation7], 1
    %s727 = scalar_lea.sflag [#allocation7], 1
    %728 = vsyncpa %s727, 1
    %729 = vsyncpa [#allocation9], 1

</llo_original>
